<compile_context>
chip_gen: v6e
topology: v6e:2x2x1
jax: 0.10.0
libtpu: 0.0.40
codegen_flags: <defaults>
</compile_context>

<pallas_src>
import functools

import jax
import jax.numpy as jnp
from jax.experimental import pallas as pl
from jax.experimental.pallas import tpu as pltpu

_LANE = 128
_SUBLANE = 8
_NEG_BIG = -1e30  # padded-action bias -> exp() underflows to exactly 0


def _round_up(x, m):
    return (x + m - 1) // m * m


def actor_kernel(x_ref, wb1_ref, wb2_ref, o_ref, *, num_inputs, hidden):
    """One batch tile: softmax(relu(x @ W1 + b1) @ W2 + b2) on a lane-dense,
    padded action axis. Biases live in row `num_inputs` / `hidden` of the
    packed weight refs."""
    x = x_ref[...]

    # ---- Linear 1 + ReLU (MXU matmul, f32 accumulate) ----
    w1 = wb1_ref[:num_inputs, :]
    b1 = wb1_ref[num_inputs:num_inputs + 1, :].astype(jnp.float32)
    h = jnp.dot(x, w1, preferred_element_type=jnp.float32) + b1
    h = jnp.maximum(h, 0.0)

    # ---- Linear 2 (padded action columns carry -1e30 bias) ----
    w2 = wb2_ref[:hidden, :]
    b2 = wb2_ref[hidden:hidden + 1, :].astype(jnp.float32)
    logits = jnp.dot(h.astype(w2.dtype), w2,
                     preferred_element_type=jnp.float32) + b2

    # ---- Numerically stable softmax over the 128-lane action axis (f32) ----
    m = jnp.max(logits, axis=-1, keepdims=True)
    e = jnp.exp(logits - m)
    s = jnp.sum(e, axis=-1, keepdims=True)
    # approx reciprocal runs in the EUP slot instead of a VPU Newton sequence.
    o_ref[...] = (e * pl.reciprocal(s, approx=True)).astype(o_ref.dtype)


def actor_forward(state, wb1, wb2, *, num_actions, block_b=512):
    """state: [B, F]; wb1: [>=F+1, H] (bias in row F); wb2: [>=H+1, A_pad]
    (bias in row H, A_pad a multiple of 128). Returns policy [B, num_actions]
    in f32."""
    # TODO(synk): in a full A2C step, fuse the Critic head into this same
    # pallas_call to share the state DMA and kernel launch.
    B, F = state.shape
    H = wb1.shape[1]
    A_pad = wb2.shape[1]
    assert wb1.shape[0] >= F + 1 and wb2.shape[0] >= H + 1
    assert A_pad % _LANE == 0 and num_actions <= A_pad

    # Batch tiling: grid over B, weights VMEM-resident across grid steps.
    tile_b = min(_round_up(block_b, _SUBLANE), _round_up(B, _SUBLANE))
    B_pad = _round_up(B, tile_b)
    if B_pad != B:
        state = jnp.pad(state, ((0, B_pad - B), (0, 0)))
    state = state.astype(wb1.dtype)  # bf16 matmul inputs when params are bf16

    kernel = functools.partial(actor_kernel, num_inputs=F, hidden=H)
    out = pl.pallas_call(
        kernel,
        out_shape=jax.ShapeDtypeStruct((B_pad, A_pad), jnp.float32),
        grid=(B_pad // tile_b,),
        in_specs=[
            pl.BlockSpec((tile_b, F), lambda i: (i, 0)),
            pl.BlockSpec(wb1.shape, lambda i: (0, 0)),   # resident weights
            pl.BlockSpec(wb2.shape, lambda i: (0, 0)),   # resident weights
        ],
        out_specs=pl.BlockSpec((tile_b, A_pad), lambda i: (i, 0)),
        compiler_params=pltpu.CompilerParams(
            dimension_semantics=("parallel",),  # shards batch across v7x's 2 TCs
        ),
    )(state, wb1, wb2)
    return out[:B, :num_actions]


def init_actor_params(key, num_inputs, num_actions, hidden_size=256):
    """nn.Linear-style U(-1/sqrt(fan_in), +1/sqrt(fan_in)) init; weights are
    stored already transposed to [in, out]."""
    k1, k2, k3, k4 = jax.random.split(key, 4)
    bound1 = 1.0 / jnp.sqrt(num_inputs)
    bound2 = 1.0 / jnp.sqrt(hidden_size)
    w1 = jax.random.uniform(k1, (num_inputs, hidden_size), jnp.float32, -bound1, bound1)
    b1 = jax.random.uniform(k2, (hidden_size,), jnp.float32, -bound1, bound1)
    w2 = jax.random.uniform(k3, (hidden_size, num_actions), jnp.float32, -bound2, bound2)
    b2 = jax.random.uniform(k4, (num_actions,), jnp.float32, -bound2, bound2)
    return w1, b1, w2, b2


def pack_actor_params(w1, b1, w2, b2, *, matmul_dtype=jnp.float32):
    """Fold biases into the weight matrices (extra row) and lane-pad the action
    dim to a multiple of 128. Padded action columns get weight 0 / bias -1e30
    so the softmax assigns them exactly zero probability. Row counts are padded
    to a multiple of 8 (sublane alignment) with zeros that are never read."""
    F, H = w1.shape
    A = w2.shape[1]
    A_pad = _round_up(A, _LANE)

    wb1 = jnp.concatenate([w1, b1[None, :]], axis=0)                 # [F+1, H]
    wb1 = jnp.pad(wb1, ((0, _round_up(F + 1, _SUBLANE) - (F + 1)), (0, 0)))

    w2p = jnp.pad(w2, ((0, 0), (0, A_pad - A)))
    b2p = jnp.pad(b2, (0, A_pad - A), constant_values=_NEG_BIG)
    wb2 = jnp.concatenate([w2p, b2p[None, :]], axis=0)               # [H+1, A_pad]
    wb2 = jnp.pad(wb2, ((0, _round_up(H + 1, _SUBLANE) - (H + 1)), (0, 0)))

    return wb1.astype(matmul_dtype), wb2.astype(matmul_dtype)


def actor_reference(state, w1, b1, w2, b2):
    h = jnp.maximum(state @ w1 + b1, 0.0)
    return jax.nn.softmax(h @ w2 + b2, axis=1)


if __name__ == "__main__":
    key = jax.random.PRNGKey(0)
    k_state, k_params = jax.random.split(key)

    batch, num_inputs, num_actions, hidden = 50, 32, 8, 256
    state = jax.random.normal(k_state, (batch, num_inputs), jnp.float32)
    w1, b1, w2, b2 = init_actor_params(k_params, num_inputs, num_actions, hidden)
    ref = actor_reference(state, w1, b1, w2, b2)

    # f32 matmul path; small batch tile so the demo exercises a multi-step grid
    # (with batch padding: 50 rows -> 64 padded rows, 2 grid steps of 32).
    wb1, wb2 = pack_actor_params(w1, b1, w2, b2, matmul_dtype=jnp.float32)
    out = jax.block_until_ready(
        actor_forward(state, wb1, wb2, num_actions=num_actions, block_b=32))
    assert out.shape == (batch, num_actions)
    assert jnp.allclose(out, ref, atol=5e-3, rtol=0.0), \
        float(jnp.max(jnp.abs(out - ref)))
    assert jnp.allclose(jnp.sum(out, axis=1), 1.0, atol=5e-3)

    # bf16 matmul-input path (MXU-native on v5e/v6e); softmax stays in f32.
    wb1_bf, wb2_bf = pack_actor_params(w1, b1, w2, b2, matmul_dtype=jnp.bfloat16)
    out_bf = jax.block_until_ready(
        actor_forward(state, wb1_bf, wb2_bf, num_actions=num_actions, block_b=32))
    assert out_bf.shape == (batch, num_actions)
    assert jnp.allclose(out_bf, ref, atol=3e-2, rtol=0.0), \
        float(jnp.max(jnp.abs(out_bf - ref)))

    print("KERNEL_OK")
</pallas_src>

<mosaic_0001>
module attributes {stable_mosaic.version = 11 : i64} {
  func.func @actor_kernel(%arg0: i32, %arg1: memref<32x32xf32, #tpu.memory_space<vmem>>, %arg2: memref<40x256xf32, #tpu.memory_space<vmem>>, %arg3: memref<264x128xf32, #tpu.memory_space<vmem>>, %arg4: memref<32x128xf32, #tpu.memory_space<vmem>>) attributes {dimension_semantics = [#tpu.dimension_semantics<parallel>], iteration_bounds = array<i64: 2>, scalar_prefetch = 0 : i64, scratch_operands = 0 : i64, tpu.core_type = #tpu.core_type<tc>, window_params = [{transform_indices = @transform_0, window_bounds = array<i64: 32, 32>}, {pipeline_mode = #tpu.pipeline_mode<synchronous>, transform_indices = @transform_1, window_bounds = array<i64: 40, 256>}, {pipeline_mode = #tpu.pipeline_mode<synchronous>, transform_indices = @transform_2, window_bounds = array<i64: 264, 128>}, {transform_indices = @transform_3, window_bounds = array<i64: 32, 128>}]} {
    %c0 = arith.constant 0 : index
    %c0_0 = arith.constant 0 : index
    %0 = vector.load %arg1[%c0, %c0_0] : memref<32x32xf32, #tpu.memory_space<vmem>>, vector<32x32xf32>
    %c0_1 = arith.constant 0 : index
    %c0_2 = arith.constant 0 : index
    %1 = vector.load %arg2[%c0_1, %c0_2] : memref<40x256xf32, #tpu.memory_space<vmem>>, vector<32x256xf32>
    %c32 = arith.constant 32 : index
    %c0_3 = arith.constant 0 : index
    %2 = vector.load %arg2[%c32, %c0_3] : memref<40x256xf32, #tpu.memory_space<vmem>>, vector<1x256xf32>
    %cst = arith.constant dense<0.000000e+00> : vector<32x256xf32>
    %3 = tpu.matmul %0, %1, %cst {dimension_numbers = #tpu.dot_dimension_numbers<[1], [0], [0], [1], [0, 0, 1, 1], [], []>} : vector<32x32xf32>, vector<32x256xf32>, vector<32x256xf32> -> vector<32x256xf32>
    %4 = vector.broadcast %2 : vector<1x256xf32> to vector<32x256xf32>
    %5 = arith.addf %3, %4 : vector<32x256xf32>
    %cst_4 = arith.constant 0.000000e+00 : f32
    %6 = vector.broadcast %cst_4 : f32 to vector<32x256xf32>
    %7 = arith.maximumf %5, %6 : vector<32x256xf32>
    %c0_5 = arith.constant 0 : index
    %c0_6 = arith.constant 0 : index
    %8 = vector.load %arg3[%c0_5, %c0_6] : memref<264x128xf32, #tpu.memory_space<vmem>>, vector<256x128xf32>
    %c256 = arith.constant 256 : index
    %c0_7 = arith.constant 0 : index
    %9 = vector.load %arg3[%c256, %c0_7] : memref<264x128xf32, #tpu.memory_space<vmem>>, vector<1x128xf32>
    %cst_8 = arith.constant dense<0.000000e+00> : vector<32x128xf32>
    %10 = tpu.matmul %7, %8, %cst_8 {dimension_numbers = #tpu.dot_dimension_numbers<[1], [0], [0], [1], [0, 0, 1, 1], [], []>} : vector<32x256xf32>, vector<256x128xf32>, vector<32x128xf32> -> vector<32x128xf32>
    %11 = vector.broadcast %9 : vector<1x128xf32> to vector<32x128xf32>
    %12 = arith.addf %10, %11 : vector<32x128xf32>
    %cst_9 = arith.constant dense<0xFF800000> : vector<32xf32>
    %13 = vector.multi_reduction <maximumf>, %12, %cst_9 [1] : vector<32x128xf32> to vector<32xf32>
    %14 = vector.shape_cast %13 : vector<32xf32> to vector<32x1xf32>
    %15 = vector.broadcast %14 : vector<32x1xf32> to vector<32x128xf32>
    %16 = arith.subf %12, %15 : vector<32x128xf32>
    %17 = math.exp %16 : vector<32x128xf32>
    %cst_10 = arith.constant dense<0.000000e+00> : vector<32xf32>
    %18 = vector.multi_reduction <add>, %17, %cst_10 [1] : vector<32x128xf32> to vector<32xf32>
    %19 = vector.shape_cast %18 : vector<32xf32> to vector<32x1xf32>
    %20 = tpu.reciprocal %19 {approx = true} : vector<32x1xf32> -> vector<32x1xf32>
    %21 = vector.broadcast %20 : vector<32x1xf32> to vector<32x128xf32>
    %22 = arith.mulf %17, %21 : vector<32x128xf32>
    %c0_11 = arith.constant 0 : index
    %c0_12 = arith.constant 0 : index
    %23 = vector.load %arg4[%c0_11, %c0_12] : memref<32x128xf32, #tpu.memory_space<vmem>>, vector<32x128xf32>
    tpu.vector_store %arg4[%c0_11, %c0_12], %22 {strides = array<i32>} : memref<32x128xf32, #tpu.memory_space<vmem>>, vector<32x128xf32>,
    return
  }
  func.func @transform_0(%arg0: i32) -> (i32, i32) {
    %c0_i32 = arith.constant 0 : i32
    %c0_i32_0 = arith.constant 0 : i32
    return %arg0, %c0_i32 : i32, i32
  }
  func.func @transform_1(%arg0: i32) -> (i32, i32) {
    %c0_i32 = arith.constant 0 : i32
    %c0_i32_0 = arith.constant 0 : i32
    %c0_i32_1 = arith.constant 0 : i32
    return %c0_i32, %c0_i32_0 : i32, i32
  }
  func.func @transform_2(%arg0: i32) -> (i32, i32) {
    %c0_i32 = arith.constant 0 : i32
    %c0_i32_0 = arith.constant 0 : i32
    %c0_i32_1 = arith.constant 0 : i32
    return %c0_i32, %c0_i32_0 : i32, i32
  }
  func.func @transform_3(%arg0: i32) -> (i32, i32) {
    %c0_i32 = arith.constant 0 : i32
    %c0_i32_0 = arith.constant 0 : i32
    return %arg0, %c0_i32 : i32, i32
  }
}

</mosaic_0001>

<llo_original>
// kernel: tpu_custom_call.1
$region0: #{tpu_custom_call.1}
  #allocation0 [shape = 'u32[]', space=smem, size = 0x4, offset = 0x4, fixed_abs, tag = 'smem constant byte address 0x4 - core index']
  #allocation1 [shape = 'u32[144,128]{1,0:T(1,128)}', space=vmem, size = 0x12000, scoped, tag = 'internal scratch']
  %s0 = inlined_call_operand.vmem [shape: f32[64,32], index: 0, kind: input, shape index: {}]
  %s1 = inlined_call_operand.vmem [shape: f32[40,256], index: 1, kind: input, shape index: {}]
  %s2 = inlined_call_operand.hbm [shape: f32[264,128], index: 2, kind: input, shape index: {}]
  %s3 = inlined_call_operand.hbm [shape: f32[64,128], index: 3, kind: output, shape index: {}]
  %s4 = sld [smem:[#allocation0]]
  $region49: #{tpu_custom_call.1} parent=0
    _
  %s6 = ssub.s32 1, %s4
  %s7 = scalar_select 0, %s6, %s4
  $region1: #{tpu_custom_call.1} parent=0
    #allocation2 [shape = 'u8[135168]{0}', space=vmem, size = 0x21000, scoped, tag = 'input window, operand 2, single buffered']
    #allocation3 [shape = 's32[2]{0}', space=sflag, size = 0x8, scoped, tag = 'scoped memory for tpu_custom_call.1']
    #allocation4 [shape = 's32[2]{0}', space=sflag, size = 0x8, scoped, tag = 'scoped memory for tpu_custom_call.1']
    #allocation5 [shape = 'u8[32768]{0}', space=vmem, size = 0x8000, scoped, tag = 'output window, operand 0']
    %8 = vsyncpa [#allocation3], 0
    %9 = vsyncpa [#allocation4], 0
    %s10 = scalar_lea.sflag [#allocation4], 1
    %11 = vsyncpa %s10, 0
    loop: start=0, step=1, limit=4
    $region2: #{tpu_custom_call.1} parent=1 // loop_pre_header
      _
    $region3: #{tpu_custom_call.1} parent=1 // loop_header
      %s13 = sphi 0, %s17
      %p14 = scmp.ge.s32.totalorder %s13, 4
      %s23 = sphi 0, %s25
      %s26 = sphi 0, %s23
      %s27 = sphi 0, %s26
      %s43 = sphi 0, %s27
      %s47 = sphi 0, %s47
      %s49 = sphi 0, %s47
      %s50 = sphi 0, %s49
      %s64 = sphi 0, %s50
      %s68 = sphi 0, %s68
      %s70 = sphi 0, %s68
      %s71 = sphi 0, %s70
      %s85 = sphi 0, %s71
      %s91 = sphi 0, %s93
      %s94 = sphi 0, %s91
      %s95 = sphi 0, %s94
      %s111 = sphi 0, %s95
    $region4: #{tpu_custom_call.1} parent=1 // loop_header_branch
      %16 = sbr.rel (%p14) target = $region8
    $region5: #{tpu_custom_call.1} parent=1 // loop_body
      %s18 = ssub.s32 %s13, 1
      %s19 = ssub.s32 %s13, 2
      %s20 = sadd.s32 %s13, 1
      %s21 = ssub.s32 %s13, %s20
      %p22 = scmp.eq.s32.totalorder %s21, 0
      %s24 = sadd.s32 %s23, 1
      %s25 = scalar_select %p22, %s23, %s24
      %p28 = pneg %p22
      %p29 = scmp.eq.s32.totalorder %s13, 1
      %p30 = por %p28, %p29
      %p31 = scmp.ne.s32.totalorder %s23, %s26
      %p32 = scmp.eq.s32.totalorder %s13, 0
      %p33 = por %p31, %p32
      %p34 = scmp.ne.s32.totalorder %s23, %s26
      %p35 = scmp.eq.s32.totalorder %s18, 1
      %p36 = por %p34, %p35
      %p37 = scmp.ne.s32.totalorder %s26, %s27
      %p38 = scmp.eq.s32.totalorder %s18, 0
      %p39 = por %p37, %p38
      %p40 = scmp.ne.s32.totalorder %s26, %s27
      %p41 = scmp.eq.s32.totalorder %s19, 1
      %p42 = por %p40, %p41
      %p44 = scmp.ne.s32.totalorder %s27, %s43
      %p45 = scmp.eq.s32.totalorder %s19, 0
      %p46 = por %p44, %p45
      %s48 = sadd.s32 %s47, 1
      %p51 = scmp.eq.s32.totalorder %s13, 1
      %p52 = scmp.ne.s32.totalorder %s47, %s49
      %p53 = scmp.eq.s32.totalorder %s13, 0
      %p54 = por %p52, %p53
      %p55 = scmp.ne.s32.totalorder %s47, %s49
      %p56 = scmp.eq.s32.totalorder %s18, 1
      %p57 = por %p55, %p56
      %p58 = scmp.ne.s32.totalorder %s49, %s50
      %p59 = scmp.eq.s32.totalorder %s18, 0
      %p60 = por %p58, %p59
      %p61 = scmp.ne.s32.totalorder %s49, %s50
      %p62 = scmp.eq.s32.totalorder %s19, 1
      %p63 = por %p61, %p62
      %p65 = scmp.ne.s32.totalorder %s50, %s64
      %p66 = scmp.eq.s32.totalorder %s19, 0
      %p67 = por %p65, %p66
      %s69 = sadd.s32 %s68, 1
      %p72 = scmp.eq.s32.totalorder %s13, 1
      %p73 = scmp.ne.s32.totalorder %s68, %s70
      %p74 = scmp.eq.s32.totalorder %s13, 0
      %p75 = por %p73, %p74
      %p76 = scmp.ne.s32.totalorder %s68, %s70
      %p77 = scmp.eq.s32.totalorder %s18, 1
      %p78 = por %p76, %p77
      %p79 = scmp.ne.s32.totalorder %s70, %s71
      %p80 = scmp.eq.s32.totalorder %s18, 0
      %p81 = por %p79, %p80
      %p82 = scmp.ne.s32.totalorder %s70, %s71
      %p83 = scmp.eq.s32.totalorder %s19, 1
      %p84 = por %p82, %p83
      %p86 = scmp.ne.s32.totalorder %s71, %s85
      %p87 = scmp.eq.s32.totalorder %s19, 0
      %p88 = por %p86, %p87
      %s89 = ssub.s32 %s13, %s20
      %p90 = scmp.eq.s32.totalorder %s89, 0
      %s92 = sadd.s32 %s91, 1
      %s93 = scalar_select %p90, %s91, %s92
      %p96 = pneg %p90
      %p97 = scmp.eq.s32.totalorder %s13, 1
      %p98 = por %p96, %p97
      %p99 = scmp.ne.s32.totalorder %s91, %s94
      %p100 = scmp.eq.s32.totalorder %s13, 0
      %p101 = por %p99, %p100
      %p102 = scmp.ne.s32.totalorder %s91, %s94
      %p103 = scmp.eq.s32.totalorder %s18, 1
      %p104 = por %p102, %p103
      %p105 = scmp.ne.s32.totalorder %s94, %s95
      %p106 = scmp.eq.s32.totalorder %s18, 0
      %p107 = por %p105, %p106
      %p108 = scmp.ne.s32.totalorder %s94, %s95
      %p109 = scmp.eq.s32.totalorder %s19, 1
      %p110 = por %p108, %p109
      %p112 = scmp.ne.s32.totalorder %s95, %s111
      %p113 = scmp.eq.s32.totalorder %s19, 0
      %p114 = por %p112, %p113
      %p115 = scmp.le.s32.totalorder 1, %s13
      %p116 = scmp.lt.s32.totalorder %s13, 3
      %p117 = pnand %p115, %p116
      %p118 = pneg %p117
      // Predicated region
      $region9: #{tpu_custom_call.1} parent=5 // pred_check
        _
      $region10: #{tpu_custom_call.1} parent=5 // pred_check_branch
        %120 = sbr.rel (%p117) target = $region12
      $region11: #{tpu_custom_call.1} parent=5 // pred_region
        %s121 = ssub.s32 %s13, 1
        // Predicated region
        $region13: #{tpu_custom_call.1} parent=11 // pred_check
          %p122 = pneg %p60
        $region14: #{tpu_custom_call.1} parent=11 // pred_check_branch
          %124 = sbr.rel (%p122) target = $region16
        $region15: #{tpu_custom_call.1} parent=11 // pred_region
          _
        $region16: #{tpu_custom_call.1} parent=11 // pred_fallthru
          _
        // Predicated region
        $region17: #{tpu_custom_call.1} parent=11 // pred_check
          %p125 = pneg %p81
        $region18: #{tpu_custom_call.1} parent=11 // pred_check_branch
          %127 = sbr.rel (%p125) target = $region20
        $region19: #{tpu_custom_call.1} parent=11 // pred_region
          %s129 = ssub.s32 4224, 4224
          %130 = vsyncadd [#allocation3], %s129
          %s131 = sshll.u32 [#allocation2], 4
          %s132 = int_to_ptr.vmem [resolvable:$true] %s131
          %137 = dma.hbm_to_vmem [thread:$0]  %s2, 4224, %s132, [#allocation3], 128, 128, 8
        $region20: #{tpu_custom_call.1} parent=11 // pred_fallthru
          _
      $region12: #{tpu_custom_call.1} parent=5 // pred_fallthru
        _
      %p138 = scmp.lt.s32.totalorder %s13, 2
      // Predicated region
      $region21: #{tpu_custom_call.1} parent=5 // pred_check
        %p139 = pneg %p138
      $region22: #{tpu_custom_call.1} parent=5 // pred_check_branch
        %141 = sbr.rel (%p139) target = $region24
      $region23: #{tpu_custom_call.1} parent=5 // pred_region
        // Predicated region
        $region25: #{tpu_custom_call.1} parent=23 // pred_check
          %p142 = pneg %p33
        $region26: #{tpu_custom_call.1} parent=23 // pred_check_branch
          %144 = sbr.rel (%p142) target = $region28
        $region27: #{tpu_custom_call.1} parent=23 // pred_region
          %s145 = smul.u32 4, %s13
          %p146 = scmp.lt.s32.totalorder %s145, 7
          %s147 = scalar_select %p146, %s145, 7
          %s148 = smul.addr %s147, 8
          %s149 = scalar_lea.vmem %s0, %s148
          %s150 = smul.u32 4, %s13
        $region28: #{tpu_custom_call.1} parent=23 // pred_fallthru
          _
      $region24: #{tpu_custom_call.1} parent=5 // pred_fallthru
        _
      %p151 = scmp.le.s32.totalorder 1, %s13
      %p152 = scmp.lt.s32.totalorder %s13, 3
      %p153 = pnand %p151, %p152
      %p154 = pneg %p153
      // Predicated region
      $region29: #{tpu_custom_call.1} parent=5 // pred_check
        _
      $region30: #{tpu_custom_call.1} parent=5 // pred_check_branch
        %156 = sbr.rel (%p153) target = $region32
      $region31: #{tpu_custom_call.1} parent=5 // pred_region
        %s157 = ssub.s32 %s13, 1
        // Predicated region
        $region33: #{tpu_custom_call.1} parent=31 // pred_check
          %p158 = pneg %p81
        $region34: #{tpu_custom_call.1} parent=31 // pred_check_branch
          %160 = sbr.rel (%p158) target = $region36
        $region35: #{tpu_custom_call.1} parent=31 // pred_region
          %161 = dma.done [#allocation3], 4224
        $region36: #{tpu_custom_call.1} parent=31 // pred_fallthru
          _
        %s162 = smul.u32 4, %s18
        %p163 = scmp.lt.s32.totalorder %s162, 7
        %s164 = scalar_select %p163, %s162, 7
        %s165 = smul.addr %s164, 8
        %s166 = scalar_lea.vmem %s0, %s165
        %p167 = pneg %p39
        %p168 = pneg %p36
        %p169 = pneg %p60
        %p170 = pneg %p57
        %p171 = pneg %p81
        %p172 = pneg %p78
        %p173 = pneg %p107
        %p174 = pneg %p104
        %s175 = sand.u32 %s94, 1
        %s176 = scalar_lea.sflag [#allocation4], %s175
        %s177 = sand.u32 %s94, 1
        %s178 = smul.addr %s177, 32
        %s179 = scalar_lea.vmem [#allocation5], %s178
        %s180 = smul.u32 4, %s18
        %p181 = scmp.lt.s32.totalorder %s180, 7
        %s182 = scalar_select %p181, %s180, 7
        %s183 = smul.addr %s182, 8
        %s184 = scalar_lea.vmem %s0, %s183
        %s185 = smul.u32 4, %s18
        %s186 = smul.u32 4, %s18
        %v187 = vld [vmem:[%s184] sm:$0xff]
        %v188 = vld [vmem:[%s184 + $0x8] sm:$0xff]
        %v189 = vld [vmem:[%s184 + $0x10] sm:$0xff]
        %v190 = vld [vmem:[%s184 + $0x18] sm:$0xff]
        %v191 = vld [vmem:[%s1] sm:$0xff]
        %v192 = vld [vmem:[%s1 + $0x8] sm:$0xff]
        %v193 = vld [vmem:[%s1 + $0x10] sm:$0xff]
        %v194 = vld [vmem:[%s1 + $0x18] sm:$0xff]
        %v195 = vld [vmem:[%s1 + $0x20] sm:$0xff]
        %v196 = vld [vmem:[%s1 + $0x28] sm:$0xff]
        %v197 = vld [vmem:[%s1 + $0x30] sm:$0xff]
        %v198 = vld [vmem:[%s1 + $0x38] sm:$0xff]
        %s199 = scalar_lea.vmem %s1, 64
        %v200 = vld [vmem:[%s199] ss:$8 sm:$0x3]
        %v202 = vlaneseq
        %v203 = vshrl.u32 %v202, 7
        %v204 = vsub.s32 0, %v203
        %v205 = vrot.slane %v200, %v204
        %v206 = vlaneseq
        %v207 = vshrl.u32 %v206, 7
        %v208 = vsub.s32 1, %v207
        %v209 = vrot.slane %v200, %v208
        %vm212 = vcmask 261120
        %v214 = vsel %vm212, %v187, 0
        %v217 = vsel %vm212, %v188, 0
        %v220 = vsel %vm212, %v189, 0
        %v223 = vsel %vm212, %v190, 0
        %225 = vmatprep.subr.mxu0 0.0
        %226 = vmatpush1.msra.mxu0 0.0
        %227 = vmatprep.subr.mxu0 0.0
        %228 = vmatpush1.msra.mxu0 0.0
        %229 = vmatprep.subr.mxu0 0.0
        %230 = vmatpush1.msra.mxu0 0.0
        %231 = vmatprep.subr.mxu0 0.0
        %232 = vmatpush1.msra.mxu0 0.0
        %233 = vmatprep.subr.mxu0 0.0
        %234 = vmatpush1.msra.mxu0 0.0
        %235 = vmatprep.subr.mxu0 0.0
        %236 = vmatpush1.msra.mxu0 0.0
        %237 = vmatprep.subr.mxu0 0.0
        %238 = vmatpush1.msra.mxu0 0.0
        %239 = vmatprep.subr.mxu0 0.0
        %240 = vmatpush1.msra.mxu0 0.0
        %241 = vmatprep.subr.mxu0 0.0
        %242 = vmatpush1.msra.mxu0 0.0
        %243 = vmatprep.subr.mxu0 0.0
        %244 = vmatpush1.msra.mxu0 0.0
        %245 = vmatprep.subr.mxu0 0.0
        %246 = vmatpush1.msra.mxu0 0.0
        %247 = vmatprep.subr.mxu0 0.0
        %248 = vmatpush1.msra.mxu0 0.0
        %249 = vmatprep.subr.mxu0 %v198
        %250 = vmatpush1.msra.mxu0 %v197
        %251 = vmatprep.subr.mxu0 %v196
        %252 = vmatpush1.msra.mxu0 %v195
        %253 = vmatprep.subr.mxu0 %v194
        %254 = vmatpush1.msra.mxu0 %v193
        %255 = vmatprep.subr.mxu0 %v192
        %256 = vmatpush1.msra.mxu0 %v191
        %257 = vmatprep.subr.mxu0 0.0
        %258 = vmatpush2.msra.mxu0 0.0
        %259 = vmatprep.subr.mxu0 0.0
        %260 = vmatpush2.msra.mxu0 0.0
        %261 = vmatprep.subr.mxu0 0.0
        %262 = vmatpush2.msra.mxu0 0.0
        %263 = vmatprep.subr.mxu0 0.0
        %264 = vmatpush2.msra.mxu0 0.0
        %265 = vmatprep.subr.mxu0 0.0
        %266 = vmatpush2.msra.mxu0 0.0
        %267 = vmatprep.subr.mxu0 0.0
        %268 = vmatpush2.msra.mxu0 0.0
        %269 = vmatprep.subr.mxu0 0.0
        %270 = vmatpush2.msra.mxu0 0.0
        %271 = vmatprep.subr.mxu0 0.0
        %272 = vmatpush2.msra.mxu0 0.0
        %273 = vmatprep.subr.mxu0 0.0
        %274 = vmatpush2.msra.mxu0 0.0
        %275 = vmatprep.subr.mxu0 0.0
        %276 = vmatpush2.msra.mxu0 0.0
        %277 = vmatprep.subr.mxu0 0.0
        %278 = vmatpush2.msra.mxu0 0.0
        %279 = vmatprep.subr.mxu0 0.0
        %280 = vmatpush2.msra.mxu0 0.0
        %281 = vmatprep.subr.mxu0 0.0
        %282 = vmatpush2.msra.mxu0 0.0
        %283 = vmatprep.subr.mxu0 0.0
        %284 = vmatpush2.msra.mxu0 0.0
        %285 = vmatprep.subr.mxu0 0.0
        %286 = vmatpush2.msra.mxu0 0.0
        %287 = vmatprep.subr.mxu0 0.0
        %288 = vmatpush2.msra.mxu0 0.0
        %289 = vmatprep.mubr.f32.mxu0 0.0
        %290 = vmatmul.mubr.f32.gmra.mxu0 %v214
        %v291 = vpop.f32.mrf.mxu0
        %v292 = vadd.f32 %v205, %v291
        %v293 = vpop.f32.mrf.mxu0
        %v294 = vadd.f32 %v209, %v293
        %295 = vmatprep.mubr.f32.mxu0 0.0
        %296 = vmatmul.mubr.f32.gmra.mxu0 %v217
        %v297 = vpop.f32.mrf.mxu0
        %v298 = vadd.f32 %v205, %v297
        %v299 = vpop.f32.mrf.mxu0
        %v300 = vadd.f32 %v209, %v299
        %301 = vmatprep.mubr.f32.mxu0 0.0
        %302 = vmatmul.mubr.f32.gmra.mxu0 %v220
        %v303 = vpop.f32.mrf.mxu0
        %v304 = vadd.f32 %v205, %v303
        %v305 = vpop.f32.mrf.mxu0
        %v306 = vadd.f32 %v209, %v305
        %307 = vmatprep.mubr.f32.mxu0 0.0
        %308 = vmatmul.mubr.f32.gmra.mxu0 %v223
        %v309 = vpop.f32.mrf.mxu0
        %v310 = vadd.f32 %v205, %v309
        %v311 = vpop.f32.mrf.mxu0
        %v312 = vadd.f32 %v209, %v311
        %313 = vdwg.mxu0
        %v314 = vmax.f32 %v292, 0.0
        %v315 = vmax.f32 %v294, 0.0
        %v316 = vmax.f32 %v298, 0.0
        %v317 = vmax.f32 %v300, 0.0
        %v318 = vmax.f32 %v304, 0.0
        %v319 = vmax.f32 %v306, 0.0
        %v320 = vmax.f32 %v310, 0.0
        %v321 = vmax.f32 %v312, 0.0
        %v322 = vld [vmem:[#allocation2] sm:$0xff]
        %v323 = vld [vmem:[#allocation2 + $0x8] sm:$0xff]
        %v324 = vld [vmem:[#allocation2 + $0x10] sm:$0xff]
        %v325 = vld [vmem:[#allocation2 + $0x18] sm:$0xff]
        %v326 = vld [vmem:[#allocation2 + $0x20] sm:$0xff]
        %v327 = vld [vmem:[#allocation2 + $0x28] sm:$0xff]
        %v328 = vld [vmem:[#allocation2 + $0x30] sm:$0xff]
        %v329 = vld [vmem:[#allocation2 + $0x38] sm:$0xff]
        %v330 = vld [vmem:[#allocation2 + $0x40] sm:$0xff]
        %v331 = vld [vmem:[#allocation2 + $0x48] sm:$0xff]
        %v332 = vld [vmem:[#allocation2 + $0x50] sm:$0xff]
        %v333 = vld [vmem:[#allocation2 + $0x58] sm:$0xff]
        %v334 = vld [vmem:[#allocation2 + $0x60] sm:$0xff]
        %v335 = vld [vmem:[#allocation2 + $0x68] sm:$0xff]
        %v336 = vld [vmem:[#allocation2 + $0x70] sm:$0xff]
        %v337 = vld [vmem:[#allocation2 + $0x78] sm:$0xff]
        %v338 = vld [vmem:[#allocation2 + $0x80] sm:$0xff]
        %v339 = vld [vmem:[#allocation2 + $0x88] sm:$0xff]
        %v340 = vld [vmem:[#allocation2 + $0x90] sm:$0xff]
        %v341 = vld [vmem:[#allocation2 + $0x98] sm:$0xff]
        %v342 = vld [vmem:[#allocation2 + $0xa0] sm:$0xff]
        %v343 = vld [vmem:[#allocation2 + $0xa8] sm:$0xff]
        %v344 = vld [vmem:[#allocation2 + $0xb0] sm:$0xff]
        %v345 = vld [vmem:[#allocation2 + $0xb8] sm:$0xff]
        %v346 = vld [vmem:[#allocation2 + $0xc0] sm:$0xff]
        %v347 = vld [vmem:[#allocation2 + $0xc8] sm:$0xff]
        %v348 = vld [vmem:[#allocation2 + $0xd0] sm:$0xff]
        %v349 = vld [vmem:[#allocation2 + $0xd8] sm:$0xff]
        %v350 = vld [vmem:[#allocation2 + $0xe0] sm:$0xff]
        %v351 = vld [vmem:[#allocation2 + $0xe8] sm:$0xff]
        %v352 = vld [vmem:[#allocation2 + $0xf0] sm:$0xff]
        %v353 = vld [vmem:[#allocation2 + $0xf8] sm:$0xff]
        %v354 = vld [vmem:[#allocation2 + $0x100] sm:$0x1]
        %v355 = vlaneseq
        %v356 = vshrl.u32 %v355, 7
        %v357 = vsub.s32 0, %v356
        %v358 = vrot.slane %v354, %v357
        %359 = vmatprep.subr.mxu0 0.0
        %360 = vmatpush1.msra.mxu0 %v337
        %361 = vmatprep.subr.mxu0 0.0
        %362 = vmatpush1.msra.mxu0 %v336
        %363 = vmatprep.subr.mxu0 0.0
        %364 = vmatpush1.msra.mxu0 %v335
        %365 = vmatprep.subr.mxu0 0.0
        %366 = vmatpush1.msra.mxu0 %v334
        %367 = vmatprep.subr.mxu0 0.0
        %368 = vmatpush1.msra.mxu0 %v333
        %369 = vmatprep.subr.mxu0 0.0
        %370 = vmatpush1.msra.mxu0 %v332
        %371 = vmatprep.subr.mxu0 0.0
        %372 = vmatpush1.msra.mxu0 %v331
        %373 = vmatprep.subr.mxu0 0.0
        %374 = vmatpush1.msra.mxu0 %v330
        %375 = vmatprep.subr.mxu0 0.0
        %376 = vmatpush1.msra.mxu0 %v329
        %377 = vmatprep.subr.mxu0 0.0
        %378 = vmatpush1.msra.mxu0 %v328
        %379 = vmatprep.subr.mxu0 0.0
        %380 = vmatpush1.msra.mxu0 %v327
        %381 = vmatprep.subr.mxu0 0.0
        %382 = vmatpush1.msra.mxu0 %v326
        %383 = vmatprep.subr.mxu0 0.0
        %384 = vmatpush1.msra.mxu0 %v325
        %385 = vmatprep.subr.mxu0 0.0
        %386 = vmatpush1.msra.mxu0 %v324
        %387 = vmatprep.subr.mxu0 0.0
        %388 = vmatpush1.msra.mxu0 %v323
        %389 = vmatprep.subr.mxu0 0.0
        %390 = vmatpush1.msra.mxu0 %v322
        %391 = vmatprep.subr.mxu0 0.0
        %392 = vmatpush2.msra.mxu0 %v353
        %393 = vmatprep.subr.mxu0 0.0
        %394 = vmatpush2.msra.mxu0 %v352
        %395 = vmatprep.subr.mxu0 0.0
        %396 = vmatpush2.msra.mxu0 %v351
        %397 = vmatprep.subr.mxu0 0.0
        %398 = vmatpush2.msra.mxu0 %v350
        %399 = vmatprep.subr.mxu0 0.0
        %400 = vmatpush2.msra.mxu0 %v349
        %401 = vmatprep.subr.mxu0 0.0
        %402 = vmatpush2.msra.mxu0 %v348
        %403 = vmatprep.subr.mxu0 0.0
        %404 = vmatpush2.msra.mxu0 %v347
        %405 = vmatprep.subr.mxu0 0.0
        %406 = vmatpush2.msra.mxu0 %v346
        %407 = vmatprep.subr.mxu0 0.0
        %408 = vmatpush2.msra.mxu0 %v345
        %409 = vmatprep.subr.mxu0 0.0
        %410 = vmatpush2.msra.mxu0 %v344
        %411 = vmatprep.subr.mxu0 0.0
        %412 = vmatpush2.msra.mxu0 %v343
        %413 = vmatprep.subr.mxu0 0.0
        %414 = vmatpush2.msra.mxu0 %v342
        %415 = vmatprep.subr.mxu0 0.0
        %416 = vmatpush2.msra.mxu0 %v341
        %417 = vmatprep.subr.mxu0 0.0
        %418 = vmatpush2.msra.mxu0 %v340
        %419 = vmatprep.subr.mxu0 0.0
        %420 = vmatpush2.msra.mxu0 %v339
        %421 = vmatprep.subr.mxu0 0.0
        %422 = vmatpush2.msra.mxu0 %v338
        %423 = vmatprep.mubr.f32.mxu0 %v315
        %424 = vmatmul.mubr.f32.gmra.mxu0 %v314
        %v425 = vpop.f32.mrf.mxu0
        %v426 = vadd.f32 %v358, %v425
        %v427 = vpop.f32.mrf.mxu0
        %428 = vmatprep.mubr.f32.mxu0 %v317
        %429 = vmatmul.mubr.f32.gmra.mxu0 %v316
        %v430 = vpop.f32.mrf.mxu0
        %v431 = vadd.f32 %v358, %v430
        %v432 = vpop.f32.mrf.mxu0
        %433 = vmatprep.mubr.f32.mxu0 %v319
        %434 = vmatmul.mubr.f32.gmra.mxu0 %v318
        %v435 = vpop.f32.mrf.mxu0
        %v436 = vadd.f32 %v358, %v435
        %v437 = vpop.f32.mrf.mxu0
        %438 = vmatprep.mubr.f32.mxu0 %v321
        %439 = vmatmul.mubr.f32.gmra.mxu0 %v320
        %v440 = vpop.f32.mrf.mxu0
        %v441 = vadd.f32 %v358, %v440
        %v442 = vpop.f32.mrf.mxu0
        %443 = vdwg.mxu0
        %444 = vmax.xlane.f32.xlu0 %v426
        %v445 = vpop.xlane.xlu0 %444
        %446 = vmax.xlane.f32.xlu0 %v431
        %v447 = vpop.xlane.xlu0 %446
        %448 = vmax.xlane.f32.xlu0 %v436
        %v449 = vpop.xlane.xlu0 %448
        %450 = vmax.xlane.f32.xlu0 %v441
        %v451 = vpop.xlane.xlu0 %450
        %v452 = vsub.f32 %v426, %v445
        %v453 = vsub.f32 %v431, %v447
        %v454 = vsub.f32 %v436, %v449
        %v455 = vsub.f32 %v441, %v451
        %v456 = vmul.f32 %v452, 1.442695
        %v457 = vpow.pop %v456
        %v458 = vmul.f32 %v453, 1.442695
        %v459 = vpow.pop %v458
        %v460 = vmul.f32 %v454, 1.442695
        %v461 = vpow.pop %v460
        %v462 = vmul.f32 %v455, 1.442695
        %v463 = vpow.pop %v462
        %464 = vadd.xlane.f32.xlu0 %v457
        %v465 = vpop.xlane.xlu0 %464
        %466 = vadd.xlane.f32.xlu0 %v459
        %v467 = vpop.xlane.xlu0 %466
        %468 = vadd.xlane.f32.xlu0 %v461
        %v469 = vpop.xlane.xlu0 %468
        %470 = vadd.xlane.f32.xlu0 %v463
        %v471 = vpop.xlane.xlu0 %470
        %v472 = vrcp.pop %v465
        %v473 = vrcp.pop %v467
        %v474 = vrcp.pop %v469
        %v475 = vrcp.pop %v471
        %v476 = vmul.f32 %v457, %v472
        %v477 = vmul.f32 %v459, %v473
        %v478 = vmul.f32 %v461, %v474
        %v479 = vmul.f32 %v463, %v475
        %480 = vst [vmem:[%s179] sm:$0xff] %v476
        %481 = vst [vmem:[%s179 + $0x8] sm:$0xff] %v477
        %482 = vst [vmem:[%s179 + $0x10] sm:$0xff] %v478
        %483 = vst [vmem:[%s179 + $0x18] sm:$0xff] %v479
        %s484 = sand.u32 %s94, 1
        %s485 = scalar_lea.sflag [#allocation4], %s484
        %s486 = sand.u32 %s94, 1
        %s487 = smul.addr %s486, 32
        %s488 = scalar_lea.vmem [#allocation5], %s487
        // Predicated region
        $region37: #{tpu_custom_call.1} parent=31 // pred_check
          %p489 = pneg %p104
        $region38: #{tpu_custom_call.1} parent=31 // pred_check_branch
          %491 = sbr.rel (%p489) target = $region40
        $region39: #{tpu_custom_call.1} parent=31 // pred_region
          %s492 = smul.u32 4, %s18
          %s494 = ssub.s32 512, 512
          %495 = vsyncadd %s485, %s494
          %s496 = smul.addr %s492, 128
          %s497 = scalar_lea.hbm %s3, %s496
          %s498 = sshll.u32 %s488, 4
          %s499 = int_to_ptr.vmem [resolvable:$true] %s498
          %504 = dma.vmem_to_hbm [thread:$0]  %s499, 512, %s497, %s485, 128, 128, 8
        $region40: #{tpu_custom_call.1} parent=31 // pred_fallthru
          _
      $region32: #{tpu_custom_call.1} parent=5 // pred_fallthru
        _
      %p505 = scmp.le.s32.totalorder 2, %s13
      // Predicated region
      $region41: #{tpu_custom_call.1} parent=5 // pred_check
        %p506 = pneg %p505
      $region42: #{tpu_custom_call.1} parent=5 // pred_check_branch
        %508 = sbr.rel (%p506) target = $region44
      $region43: #{tpu_custom_call.1} parent=5 // pred_region
        %s509 = ssub.s32 %s13, 2
        // Predicated region
        $region45: #{tpu_custom_call.1} parent=43 // pred_check
          %p510 = pneg %p110
        $region46: #{tpu_custom_call.1} parent=43 // pred_check_branch
          %512 = sbr.rel (%p510) target = $region48
        $region47: #{tpu_custom_call.1} parent=43 // pred_region
          %s513 = sand.u32 %s95, 1
          %s514 = scalar_lea.sflag [#allocation4], %s513
          %s515 = sand.u32 %s95, 1
          %s516 = smul.addr %s515, 32
          %s517 = scalar_lea.vmem [#allocation5], %s516
          %518 = dma.done %s514, 512
        $region48: #{tpu_custom_call.1} parent=43 // pred_fallthru
          _
      $region44: #{tpu_custom_call.1} parent=5 // pred_fallthru
        _
    $region6: #{tpu_custom_call.1} parent=1 // loop_footer
      %s17 = sadd.s32 1, %s13
    $region7: #{tpu_custom_call.1} parent=1 // loop_footer_branch
      %12 = sbr.rel target = $region3
    $region8: #{tpu_custom_call.1} parent=1 // loop_exit
      _
    %519 = vsyncpa [#allocation3], 1
    %s520 = scalar_lea.sflag [#allocation3], 1
    %521 = vsyncpa %s520, 1
    %522 = vsyncpa [#allocation4], 1
    %s523 = scalar_lea.sflag [#allocation4], 1
    %524 = vsyncpa %s523, 1

</llo_original>
